<compile_context>
chip_gen: v5e
topology: v5e:2x2
jax: 0.10.0
libtpu: 0.0.40
codegen_flags: <defaults>
</compile_context>

<pallas_src>
import jax
import jax.numpy as jnp
from jax.experimental import pallas as pl
from jax.experimental.pallas import tpu as pltpu


_BATCH_SLOTS_PER_CHUNK = 8   # bound elementwise temporaries to a few planes


def _round_up(x, m):
    return ((x + m - 1) // m) * m


def _cdiv(a, b):
    return -(-a // b)


def _vmem_budget(block_bytes_override=None):
    """(per-input block byte target, scoped VMEM limit), gated per chip."""
    try:
        cap = pltpu.get_tpu_info().vmem_capacity_bytes
    except Exception:  # off-TPU / API drift: conservative fallback
        cap = 64 * 1024 * 1024
    if cap >= 128 * 1024 * 1024:      # v5e / v6e: huge VMEM headroom
        target, limit = 2 * 1024 * 1024, 64 * 1024 * 1024
    else:                              # v7x: only 64 MiB physical VMEM
        target, limit = 1 * 1024 * 1024, 32 * 1024 * 1024
    if block_bytes_override is not None:
        target = int(block_bytes_override)
    return target, limit


def _make_kernel(*, C, half, nb, k_steps, full_blocks, rem,
                 inv_nmag, inv_nphase, factor):
    """Kernel closure over all static shape / normalization parameters."""

    def kernel(p_ref, t_ref, out_ref, acc_h_ref, acc_p_ref):
        k = pl.program_id(1)
        lin = pl.program_id(0) * k_steps + k        # linear data-block index

        @pl.when(k == 0)
        def _init():
            acc_h_ref[...] = jnp.zeros_like(acc_h_ref)
            acc_p_ref[...] = jnp.zeros_like(acc_p_ref)

        def accumulate(n_valid):
            # Walk the block in small (<=8 batch, 1 channel) plane groups so
            # the d/|d|/huber/cos temporaries stay in a handful of vregs and
            # never round-trip through VMEM (v5e has 1 vector-store slot).
            step = max(1, min(n_valid, _BATCH_SLOTS_PER_CHUNK))
            for b0 in range(0, n_valid, step):
                b1 = min(n_valid, b0 + step)
                hub = None
                ph = None
                for c in range(C):
                    d = (p_ref[b0:b1, c, :, :].astype(jnp.float32)
                         - t_ref[b0:b1, c, :, :].astype(jnp.float32))
                    if c < half:
                        # nn.HuberLoss (delta=1.0), un-normalized partials.
                        ad = jnp.abs(d)
                        v = jnp.where(ad < 1.0, 0.5 * d * d, ad - 0.5).sum(axis=0)
                        hub = v if hub is None else hub + v
                    else:
                        # CircularLoss: 1 - cos(dphi), un-normalized partials.
                        v = (1.0 - jnp.cos(d)).sum(axis=0)
                        ph = v if ph is None else ph + v
                if hub is not None:
                    acc_h_ref[...] += hub
                if ph is not None:
                    acc_p_ref[...] += ph

        # Fully populated blocks: no masking of any kind.
        @pl.when(lin < full_blocks)
        def _full():
            accumulate(nb)

        # Ragged final block: only the first `rem` batch slots are valid; the
        # count is static so a static slice replaces any vector mask.
        if rem > 0:
            @pl.when(lin == full_blocks)
            def _partial():
                accumulate(rem)

        # Fused epilogue: one cross-lane reduction + normalization per
        # parallel slot -> lane-dense scalar block; the wrapper just sums
        # <=2 values.
        @pl.when(k == k_steps - 1)
        def _finish():
            total = (acc_h_ref[...].sum() * inv_nmag
                     + factor * (acc_p_ref[...].sum() * inv_nphase))
            out_ref[...] = jnp.full(out_ref.shape, total, dtype=out_ref.dtype)

    return kernel


def radiation_loss_dB(pred, target, *, rad_phase_factor=1.0, mag_loss="huber",
                      block_bytes=None):
    """Pallas implementation of radiation_loss_dB.forward (mag_loss='huber')."""
    assert mag_loss == "huber", "only the 'huber' magnitude-loss path is implemented"
    assert pred.shape == target.shape and pred.ndim == 4
    B, C, H, W = pred.shape
    half = C // 2
    assert half >= 1, "need at least one magnitude and one phase channel"

    target_bytes, vmem_limit = _vmem_budget(block_bytes)

    # Batch elements per block, sized from the *padded* VMEM footprint
    # ((H,W) planes tile to (8,128) granularity in VMEM).
    itemsize = pred.dtype.itemsize
    per_batch_vmem = C * _round_up(H, 8) * _round_up(W, 128) * itemsize
    nb = max(1, min(B, target_bytes // per_batch_vmem))

    chunks = _cdiv(B, nb)
    if chunks < 2 and B >= 2:
        # Guarantee the megacore split engages on v7x whenever there is work
        # to split (harmless extra serial step on v5e/v6e).
        nb = _cdiv(B, 2)
        chunks = _cdiv(B, nb)
    num_parallel = 2 if chunks >= 2 else 1
    chunks_padded = _round_up(chunks, num_parallel)
    k_steps = chunks_padded // num_parallel

    full_blocks = B // nb          # blocks with all nb batch slots valid
    rem = B - full_blocks * nb     # valid slots in the (single) ragged block

    n_mag = B * half * H * W
    n_phase = B * (C - half) * H * W

    kernel = _make_kernel(
        C=C, half=half, nb=nb, k_steps=k_steps,
        full_blocks=full_blocks, rem=rem,
        inv_nmag=1.0 / float(n_mag), inv_nphase=1.0 / float(n_phase),
        factor=float(rad_phase_factor))

    # Overflow steps (grid rounded up to num_parallel) clamp to the last data
    # block; their compute is skipped by the in-kernel guards.
    last_block = chunks - 1
    in_spec = pl.BlockSpec(
        (nb, C, H, W),
        lambda p, k, K=k_steps, M=last_block: (jnp.minimum(p * K + k, M), 0, 0, 0))
    out_spec = pl.BlockSpec((1, 1, 128), lambda p, k: (p, 0, 0))

    partials = pl.pallas_call(
        kernel,
        out_shape=jax.ShapeDtypeStruct((num_parallel, 1, 128), jnp.float32),
        grid_spec=pltpu.PrefetchScalarGridSpec(
            num_scalar_prefetch=0,
            grid=(num_parallel, k_steps),
            in_specs=[in_spec, in_spec],
            out_specs=out_spec,
            scratch_shapes=[pltpu.VMEM((H, W), jnp.float32),
                            pltpu.VMEM((H, W), jnp.float32)],
        ),
        compiler_params=pltpu.CompilerParams(
            dimension_semantics=("parallel", "arbitrary"),
            vmem_limit_bytes=vmem_limit,
        ),
    )(pred, target)

    # <=2 per-core partials; everything else was already reduced in-kernel.
    return partials[:, 0, 0].sum()


def _reference(pred, target, rad_phase_factor=1.0):
    c = pred.shape[1]
    half = c // 2
    pm = pred[:, :half].astype(jnp.float32)
    pp = pred[:, half:].astype(jnp.float32)
    tm = target[:, :half].astype(jnp.float32)
    tp = target[:, half:].astype(jnp.float32)
    d = pm - tm
    ad = jnp.abs(d)
    huber = jnp.where(ad < 1.0, 0.5 * d * d, ad - 0.5).mean()
    circ = (1.0 - jnp.cos(pp - tp)).mean()
    return huber + rad_phase_factor * circ


if __name__ == "__main__":
    key = jax.random.PRNGKey(0)

    def _check(pred, target, factor, *, tol=1e-5, **kw):
        got = jax.block_until_ready(
            radiation_loss_dB(pred, target, rad_phase_factor=factor,
                              mag_loss="huber", **kw))
        ref = _reference(pred, target, factor)
        assert jnp.allclose(got, ref, rtol=tol, atol=tol), (got, ref)

    # 1) Standard small NCHW radiation pattern (even channel split, 2 cores).
    k1, k2 = jax.random.split(key)
    pred = jax.random.normal(k1, (2, 4, 16, 16), jnp.float32) * 2.0
    target = jax.random.normal(k2, (2, 4, 16, 16), jnp.float32) * 2.0
    _check(pred, target, 1.0)

    # 2) Odd batch -> ragged final block (static-slice tail path).
    k3, k4 = jax.random.split(k2)
    _check(jax.random.normal(k3, (3, 4, 16, 32), jnp.float32),
           jax.random.normal(k4, (3, 4, 16, 32), jnp.float32), 0.5)

    # 3) Odd channel count: phase half gets the extra channel (matches PyTorch).
    k5, k6 = jax.random.split(k4)
    _check(jax.random.normal(k5, (2, 5, 16, 16), jnp.float32),
           jax.random.normal(k6, (2, 5, 16, 16), jnp.float32), 1.0)

    # 4) Tiny forced blocks -> multi-step reduction axis + clamped overflow step.
    k7, k8 = jax.random.split(k6)
    _check(jax.random.normal(k7, (5, 4, 16, 16), jnp.float32),
           jax.random.normal(k8, (5, 4, 16, 16), jnp.float32), 0.7,
           block_bytes=32 * 1024)

    # 5) bf16 inputs stay narrow through the DMA; math is widened in-register.
    k9, k10 = jax.random.split(k8)
    _check(jax.random.normal(k9, (2, 4, 16, 16), jnp.bfloat16),
           jax.random.normal(k10, (2, 4, 16, 16), jnp.bfloat16), 1.0, tol=1e-4)

    print("KERNEL_OK")
</pallas_src>

<mosaic_0001>
module attributes {stable_mosaic.version = 11 : i64} {
  func.func @kernel(%arg0: i32, %arg1: i32, %arg2: memref<1x4x16x16xf32, #tpu.memory_space<vmem>>, %arg3: memref<1x4x16x16xf32, #tpu.memory_space<vmem>>, %arg4: memref<1x1x128xf32, #tpu.memory_space<vmem>>, %arg5: memref<16x16xf32, #tpu.memory_space<vmem>>, %arg6: memref<16x16xf32, #tpu.memory_space<vmem>>) attributes {dimension_semantics = [#tpu.dimension_semantics<parallel>, #tpu.dimension_semantics<arbitrary>], iteration_bounds = array<i64: 2, 1>, scalar_prefetch = 0 : i64, scratch_operands = 2 : i64, tpu.core_type = #tpu.core_type<tc>, window_params = [{transform_indices = @transform_0, window_bounds = array<i64: 1, 4, 16, 16>}, {transform_indices = @transform_1, window_bounds = array<i64: 1, 4, 16, 16>}, {transform_indices = @transform_2, window_bounds = array<i64: 1, 1, 128>}]} {
    %c1_i32 = arith.constant 1 : i32
    %0 = arith.muli %arg0, %c1_i32 : i32
    %1 = arith.addi %0, %arg1 : i32
    %c0_i32 = arith.constant 0 : i32
    %2 = arith.cmpi eq, %arg1, %c0_i32 : i32
    %3 = arith.extui %2 : i1 to i32
    %c0_i32_0 = arith.constant 0 : i32
    %4 = arith.cmpi ne, %3, %c0_i32_0 : i32
    scf.if %4 {
      %cst = arith.constant 0.000000e+00 : f32
      %11 = vector.broadcast %cst : f32 to vector<16x16xf32>
      %c0 = arith.constant 0 : index
      %c0_4 = arith.constant 0 : index
      %12 = vector.load %arg5[%c0, %c0_4] : memref<16x16xf32, #tpu.memory_space<vmem>>, vector<16x16xf32>
      tpu.vector_store %arg5[%c0, %c0_4], %11 {strides = array<i32>} : memref<16x16xf32, #tpu.memory_space<vmem>>, vector<16x16xf32>,
      %cst_5 = arith.constant 0.000000e+00 : f32
      %13 = vector.broadcast %cst_5 : f32 to vector<16x16xf32>
      %c0_6 = arith.constant 0 : index
      %c0_7 = arith.constant 0 : index
      %14 = vector.load %arg6[%c0_6, %c0_7] : memref<16x16xf32, #tpu.memory_space<vmem>>, vector<16x16xf32>
      tpu.vector_store %arg6[%c0_6, %c0_7], %13 {strides = array<i32>} : memref<16x16xf32, #tpu.memory_space<vmem>>, vector<16x16xf32>,
    } else {
    }
    %c2_i32 = arith.constant 2 : i32
    %5 = arith.cmpi slt, %1, %c2_i32 : i32
    %6 = arith.extui %5 : i1 to i32
    %c0_i32_1 = arith.constant 0 : i32
    %7 = arith.cmpi ne, %6, %c0_i32_1 : i32
    scf.if %7 {
      %c0 = arith.constant 0 : index
      %c0_4 = arith.constant 0 : index
      %c0_5 = arith.constant 0 : index
      %c0_6 = arith.constant 0 : index
      %11 = vector.load %arg2[%c0, %c0_4, %c0_5, %c0_6] : memref<1x4x16x16xf32, #tpu.memory_space<vmem>>, vector<1x1x16x16xf32>
      %12 = vector.shape_cast %11 : vector<1x1x16x16xf32> to vector<1x16x16xf32>
      %c0_7 = arith.constant 0 : index
      %c0_8 = arith.constant 0 : index
      %c0_9 = arith.constant 0 : index
      %c0_10 = arith.constant 0 : index
      %13 = vector.load %arg3[%c0_7, %c0_8, %c0_9, %c0_10] : memref<1x4x16x16xf32, #tpu.memory_space<vmem>>, vector<1x1x16x16xf32>
      %14 = vector.shape_cast %13 : vector<1x1x16x16xf32> to vector<1x16x16xf32>
      %15 = arith.subf %12, %14 : vector<1x16x16xf32>
      %16 = math.absf %15 : vector<1x16x16xf32>
      %cst = arith.constant 1.000000e+00 : f32
      %17 = vector.broadcast %cst : f32 to vector<1x16x16xf32>
      %18 = arith.cmpf olt, %16, %17 : vector<1x16x16xf32>
      %cst_11 = arith.constant 5.000000e-01 : f32
      %19 = vector.broadcast %cst_11 : f32 to vector<1x16x16xf32>
      %20 = arith.mulf %19, %15 : vector<1x16x16xf32>
      %21 = arith.mulf %20, %15 : vector<1x16x16xf32>
      %cst_12 = arith.constant 5.000000e-01 : f32
      %22 = vector.broadcast %cst_12 : f32 to vector<1x16x16xf32>
      %23 = arith.subf %16, %22 : vector<1x16x16xf32>
      %24 = arith.select %18, %21, %23 : vector<1x16x16xi1>, vector<1x16x16xf32>
      %cst_13 = arith.constant dense<0.000000e+00> : vector<16x16xf32>
      %25 = vector.multi_reduction <add>, %24, %cst_13 [0] : vector<1x16x16xf32> to vector<16x16xf32>
      %c0_14 = arith.constant 0 : index
      %c1 = arith.constant 1 : index
      %c0_15 = arith.constant 0 : index
      %c0_16 = arith.constant 0 : index
      %26 = vector.load %arg2[%c0_14, %c1, %c0_15, %c0_16] : memref<1x4x16x16xf32, #tpu.memory_space<vmem>>, vector<1x1x16x16xf32>
      %27 = vector.shape_cast %26 : vector<1x1x16x16xf32> to vector<1x16x16xf32>
      %c0_17 = arith.constant 0 : index
      %c1_18 = arith.constant 1 : index
      %c0_19 = arith.constant 0 : index
      %c0_20 = arith.constant 0 : index
      %28 = vector.load %arg3[%c0_17, %c1_18, %c0_19, %c0_20] : memref<1x4x16x16xf32, #tpu.memory_space<vmem>>, vector<1x1x16x16xf32>
      %29 = vector.shape_cast %28 : vector<1x1x16x16xf32> to vector<1x16x16xf32>
      %30 = arith.subf %27, %29 : vector<1x16x16xf32>
      %31 = math.absf %30 : vector<1x16x16xf32>
      %cst_21 = arith.constant 1.000000e+00 : f32
      %32 = vector.broadcast %cst_21 : f32 to vector<1x16x16xf32>
      %33 = arith.cmpf olt, %31, %32 : vector<1x16x16xf32>
      %cst_22 = arith.constant 5.000000e-01 : f32
      %34 = vector.broadcast %cst_22 : f32 to vector<1x16x16xf32>
      %35 = arith.mulf %34, %30 : vector<1x16x16xf32>
      %36 = arith.mulf %35, %30 : vector<1x16x16xf32>
      %cst_23 = arith.constant 5.000000e-01 : f32
      %37 = vector.broadcast %cst_23 : f32 to vector<1x16x16xf32>
      %38 = arith.subf %31, %37 : vector<1x16x16xf32>
      %39 = arith.select %33, %36, %38 : vector<1x16x16xi1>, vector<1x16x16xf32>
      %cst_24 = arith.constant dense<0.000000e+00> : vector<16x16xf32>
      %40 = vector.multi_reduction <add>, %39, %cst_24 [0] : vector<1x16x16xf32> to vector<16x16xf32>
      %41 = arith.addf %25, %40 : vector<16x16xf32>
      %c0_25 = arith.constant 0 : index
      %c2 = arith.constant 2 : index
      %c0_26 = arith.constant 0 : index
      %c0_27 = arith.constant 0 : index
      %42 = vector.load %arg2[%c0_25, %c2, %c0_26, %c0_27] : memref<1x4x16x16xf32, #tpu.memory_space<vmem>>, vector<1x1x16x16xf32>
      %43 = vector.shape_cast %42 : vector<1x1x16x16xf32> to vector<1x16x16xf32>
      %c0_28 = arith.constant 0 : index
      %c2_29 = arith.constant 2 : index
      %c0_30 = arith.constant 0 : index
      %c0_31 = arith.constant 0 : index
      %44 = vector.load %arg3[%c0_28, %c2_29, %c0_30, %c0_31] : memref<1x4x16x16xf32, #tpu.memory_space<vmem>>, vector<1x1x16x16xf32>
      %45 = vector.shape_cast %44 : vector<1x1x16x16xf32> to vector<1x16x16xf32>
      %46 = arith.subf %43, %45 : vector<1x16x16xf32>
      %47 = math.cos %46 : vector<1x16x16xf32>
      %cst_32 = arith.constant 1.000000e+00 : f32
      %48 = vector.broadcast %cst_32 : f32 to vector<1x16x16xf32>
      %49 = arith.subf %48, %47 : vector<1x16x16xf32>
      %cst_33 = arith.constant dense<0.000000e+00> : vector<16x16xf32>
      %50 = vector.multi_reduction <add>, %49, %cst_33 [0] : vector<1x16x16xf32> to vector<16x16xf32>
      %c0_34 = arith.constant 0 : index
      %c3 = arith.constant 3 : index
      %c0_35 = arith.constant 0 : index
      %c0_36 = arith.constant 0 : index
      %51 = vector.load %arg2[%c0_34, %c3, %c0_35, %c0_36] : memref<1x4x16x16xf32, #tpu.memory_space<vmem>>, vector<1x1x16x16xf32>
      %52 = vector.shape_cast %51 : vector<1x1x16x16xf32> to vector<1x16x16xf32>
      %c0_37 = arith.constant 0 : index
      %c3_38 = arith.constant 3 : index
      %c0_39 = arith.constant 0 : index
      %c0_40 = arith.constant 0 : index
      %53 = vector.load %arg3[%c0_37, %c3_38, %c0_39, %c0_40] : memref<1x4x16x16xf32, #tpu.memory_space<vmem>>, vector<1x1x16x16xf32>
      %54 = vector.shape_cast %53 : vector<1x1x16x16xf32> to vector<1x16x16xf32>
      %55 = arith.subf %52, %54 : vector<1x16x16xf32>
      %56 = math.cos %55 : vector<1x16x16xf32>
      %cst_41 = arith.constant 1.000000e+00 : f32
      %57 = vector.broadcast %cst_41 : f32 to vector<1x16x16xf32>
      %58 = arith.subf %57, %56 : vector<1x16x16xf32>
      %cst_42 = arith.constant dense<0.000000e+00> : vector<16x16xf32>
      %59 = vector.multi_reduction <add>, %58, %cst_42 [0] : vector<1x16x16xf32> to vector<16x16xf32>
      %60 = arith.addf %50, %59 : vector<16x16xf32>
      %c0_43 = arith.constant 0 : index
      %c0_44 = arith.constant 0 : index
      %61 = vector.load %arg5[%c0_43, %c0_44] : memref<16x16xf32, #tpu.memory_space<vmem>>, vector<16x16xf32>
      %62 = arith.addf %61, %41 : vector<16x16xf32>
      %c0_45 = arith.constant 0 : index
      %c0_46 = arith.constant 0 : index
      %63 = vector.load %arg5[%c0_45, %c0_46] : memref<16x16xf32, #tpu.memory_space<vmem>>, vector<16x16xf32>
      tpu.vector_store %arg5[%c0_45, %c0_46], %62 {strides = array<i32>} : memref<16x16xf32, #tpu.memory_space<vmem>>, vector<16x16xf32>,
      %c0_47 = arith.constant 0 : index
      %c0_48 = arith.constant 0 : index
      %64 = vector.load %arg6[%c0_47, %c0_48] : memref<16x16xf32, #tpu.memory_space<vmem>>, vector<16x16xf32>
      %65 = arith.addf %64, %60 : vector<16x16xf32>
      %c0_49 = arith.constant 0 : index
      %c0_50 = arith.constant 0 : index
      %66 = vector.load %arg6[%c0_49, %c0_50] : memref<16x16xf32, #tpu.memory_space<vmem>>, vector<16x16xf32>
      tpu.vector_store %arg6[%c0_49, %c0_50], %65 {strides = array<i32>} : memref<16x16xf32, #tpu.memory_space<vmem>>, vector<16x16xf32>,
    } else {
    }
    %c0_i32_2 = arith.constant 0 : i32
    %8 = arith.cmpi eq, %arg1, %c0_i32_2 : i32
    %9 = arith.extui %8 : i1 to i32
    %c0_i32_3 = arith.constant 0 : i32
    %10 = arith.cmpi ne, %9, %c0_i32_3 : i32
    scf.if %10 {
      %c0 = arith.constant 0 : index
      %c0_4 = arith.constant 0 : index
      %11 = vector.load %arg5[%c0, %c0_4] : memref<16x16xf32, #tpu.memory_space<vmem>>, vector<16x16xf32>
      %12 = vector.shape_cast %11 : vector<16x16xf32> to vector<1x16x16xf32>
      %cst = arith.constant dense<0.000000e+00> : vector<1xf32>
      %13 = vector.multi_reduction <add>, %12, %cst [1, 2] : vector<1x16x16xf32> to vector<1xf32>
      %14 = vector.shape_cast %13 : vector<1xf32> to vector<1x1x1xf32>
      %15 = vector.extract %14[0, 0, 0] : f32 from vector<1x1x1xf32>
      %cst_5 = arith.constant 9.765625E-4 : f32
      %16 = arith.mulf %15, %cst_5 : f32
      %c0_6 = arith.constant 0 : index
      %c0_7 = arith.constant 0 : index
      %17 = vector.load %arg6[%c0_6, %c0_7] : memref<16x16xf32, #tpu.memory_space<vmem>>, vector<16x16xf32>
      %18 = vector.shape_cast %17 : vector<16x16xf32> to vector<1x16x16xf32>
      %cst_8 = arith.constant dense<0.000000e+00> : vector<1xf32>
      %19 = vector.multi_reduction <add>, %18, %cst_8 [1, 2] : vector<1x16x16xf32> to vector<1xf32>
      %20 = vector.shape_cast %19 : vector<1xf32> to vector<1x1x1xf32>
      %21 = vector.extract %20[0, 0, 0] : f32 from vector<1x1x1xf32>
      %cst_9 = arith.constant 9.765625E-4 : f32
      %22 = arith.mulf %21, %cst_9 : f32
      %cst_10 = arith.constant 1.000000e+00 : f32
      %23 = arith.mulf %cst_10, %22 : f32
      %24 = arith.addf %16, %23 : f32
      %25 = vector.broadcast %24 : f32 to vector<1x1x128xf32>
      %c0_11 = arith.constant 0 : index
      %c0_12 = arith.constant 0 : index
      %c0_13 = arith.constant 0 : index
      %26 = vector.load %arg4[%c0_11, %c0_12, %c0_13] : memref<1x1x128xf32, #tpu.memory_space<vmem>>, vector<1x1x128xf32>
      tpu.vector_store %arg4[%c0_11, %c0_12, %c0_13], %25 {strides = array<i32>} : memref<1x1x128xf32, #tpu.memory_space<vmem>>, vector<1x1x128xf32>,
    } else {
    }
    return
  }
  func.func @transform_0(%arg0: i32, %arg1: i32) -> (i32, i32, i32, i32) {
    %c1_i32 = arith.constant 1 : i32
    %0 = arith.muli %arg0, %c1_i32 : i32
    %1 = arith.addi %0, %arg1 : i32
    %c1_i32_0 = arith.constant 1 : i32
    %2 = arith.minsi %1, %c1_i32_0 : i32
    %c0_i32 = arith.constant 0 : i32
    %c0_i32_1 = arith.constant 0 : i32
    %c0_i32_2 = arith.constant 0 : i32
    %c0_i32_3 = arith.constant 0 : i32
    return %2, %c0_i32, %c0_i32_1, %c0_i32_2 : i32, i32, i32, i32
  }
  func.func @transform_1(%arg0: i32, %arg1: i32) -> (i32, i32, i32, i32) {
    %c1_i32 = arith.constant 1 : i32
    %0 = arith.muli %arg0, %c1_i32 : i32
    %1 = arith.addi %0, %arg1 : i32
    %c1_i32_0 = arith.constant 1 : i32
    %2 = arith.minsi %1, %c1_i32_0 : i32
    %c0_i32 = arith.constant 0 : i32
    %c0_i32_1 = arith.constant 0 : i32
    %c0_i32_2 = arith.constant 0 : i32
    %c0_i32_3 = arith.constant 0 : i32
    return %2, %c0_i32, %c0_i32_1, %c0_i32_2 : i32, i32, i32, i32
  }
  func.func @transform_2(%arg0: i32, %arg1: i32) -> (i32, i32, i32) {
    %c0_i32 = arith.constant 0 : i32
    %c0_i32_0 = arith.constant 0 : i32
    %c0_i32_1 = arith.constant 0 : i32
    return %arg0, %c0_i32, %c0_i32_0 : i32, i32, i32
  }
}

</mosaic_0001>

<llo_original>
// kernel: tpu_custom_call.1
$region0: #{tpu_custom_call.1}
  #allocation0 [shape = 'u32[]', space=smem, size = 0x4, offset = 0x4, fixed_abs, tag = 'smem constant byte address 0x4 - core index']
  #allocation1 [shape = 'u32[72,128]{1,0:T(1,128)}', space=vmem, size = 0x9000, scoped, tag = 'internal scratch']
  #allocation2 [shape = 'f32[16,16]{1,0:T(8,128)}', space=vmem, size = 0x2000, scoped, tag = 'scratch operand']
  #allocation3 [shape = 'f32[16,16]{1,0:T(8,128)}', space=vmem, size = 0x2000, scoped, tag = 'scratch operand']
  %s0 = inlined_call_operand.hbm [shape: f32[2,4,16,16], index: 0, kind: input, shape index: {}]
  %s1 = inlined_call_operand.hbm [shape: f32[2,4,16,16], index: 1, kind: input, shape index: {}]
  %s2 = inlined_call_operand.hbm [shape: f32[2,1,128], index: 2, kind: output, shape index: {}]
  %s3 = sld [smem:[#allocation0]]
  $region61: #{tpu_custom_call.1} parent=0
    _
  %s5 = ssub.s32 1, %s3
  %s6 = scalar_select 0, %s5, %s3
  $region1: #{tpu_custom_call.1} parent=0
    #allocation4 [shape = 'u8[65536]{0}', space=vmem, size = 0x10000, scoped, tag = 'input window, operand 0']
    #allocation5 [shape = 's32[2]{0}', space=sflag, size = 0x8, scoped, tag = 'scoped memory for tpu_custom_call.1']
    #allocation6 [shape = 's32[2]{0}', space=sflag, size = 0x8, scoped, tag = 'scoped memory for tpu_custom_call.1']
    #allocation7 [shape = 'u8[65536]{0}', space=vmem, size = 0x10000, scoped, tag = 'input window, operand 1']
    #allocation8 [shape = 's32[2]{0}', space=sflag, size = 0x8, scoped, tag = 'scoped memory for tpu_custom_call.1']
    #allocation9 [shape = 'u8[1024]{0}', space=vmem, size = 0x400, scoped, tag = 'output window, operand 0']
    %7 = vsyncpa [#allocation5], 0
    %s8 = scalar_lea.sflag [#allocation5], 1
    %9 = vsyncpa %s8, 0
    %10 = vsyncpa [#allocation8], 0
    %s11 = scalar_lea.sflag [#allocation8], 1
    %12 = vsyncpa %s11, 0
    %13 = vsyncpa [#allocation6], 0
    %s14 = scalar_lea.sflag [#allocation6], 1
    %15 = vsyncpa %s14, 0
    loop: start=0, step=1, limit=4
    $region2: #{tpu_custom_call.1} parent=1 // loop_pre_header
      _
    $region3: #{tpu_custom_call.1} parent=1 // loop_header
      %s17 = sphi 0, %s21
      %p18 = scmp.ge.s32.totalorder %s17, 4
      %s24 = sphi 0, %s36
      %s25 = sphi 0, %s32
      %s26 = sphi 0, %s24
      %s27 = sphi 0, %s25
      %s28 = sphi 0, %s26
      %s29 = sphi 0, %s27
      %s45 = sphi 0, %s47
      %s48 = sphi 0, %s45
      %s49 = sphi 0, %s48
      %s65 = sphi 0, %s49
      %s77 = sphi 0, %s79
      %s80 = sphi 0, %s77
      %s81 = sphi 0, %s80
      %s97 = sphi 0, %s81
      %s103 = sphi 0, %s105
      %s106 = sphi 0, %s103
      %s107 = sphi 0, %s106
      %s123 = sphi 0, %s107
    $region4: #{tpu_custom_call.1} parent=1 // loop_header_branch
      %20 = sbr.rel (%p18) target = $region8
    $region5: #{tpu_custom_call.1} parent=1 // loop_body
      %s22 = ssub.s32 %s17, 1
      %s23 = ssub.s32 %s17, 2
      %s30 = sadd.s32 1, %s25
      %p31 = scmp.ge.s32.totalorder %s30, 1
      %s32 = scalar_select %p31, 0, %s30
      %s33 = sadd.s32 1, %s24
      %s34 = scalar_select %p31, %s33, %s24
      %p35 = scmp.ge.s32.totalorder %s34, 2
      %s36 = scalar_select %p35, 0, %s34
      %s37 = sadd.s32 %s24, %s25
      %p38 = scmp.lt.s32.totalorder %s37, 1
      %s39 = scalar_select %p38, %s37, 1
      %s40 = sadd.s32 %s36, %s32
      %p41 = scmp.lt.s32.totalorder %s40, 1
      %s42 = scalar_select %p41, %s40, 1
      %s43 = ssub.s32 %s39, %s42
      %p44 = scmp.eq.s32.totalorder %s43, 0
      %s46 = sadd.s32 %s45, 1
      %s47 = scalar_select %p44, %s45, %s46
      %p50 = pneg %p44
      %p51 = scmp.eq.s32.totalorder %s17, 1
      %p52 = por %p50, %p51
      %p53 = scmp.ne.s32.totalorder %s45, %s48
      %p54 = scmp.eq.s32.totalorder %s17, 0
      %p55 = por %p53, %p54
      %p56 = scmp.ne.s32.totalorder %s45, %s48
      %p57 = scmp.eq.s32.totalorder %s22, 1
      %p58 = por %p56, %p57
      %p59 = scmp.ne.s32.totalorder %s48, %s49
      %p60 = scmp.eq.s32.totalorder %s22, 0
      %p61 = por %p59, %p60
      %p62 = scmp.ne.s32.totalorder %s48, %s49
      %p63 = scmp.eq.s32.totalorder %s23, 1
      %p64 = por %p62, %p63
      %p66 = scmp.ne.s32.totalorder %s49, %s65
      %p67 = scmp.eq.s32.totalorder %s23, 0
      %p68 = por %p66, %p67
      %s69 = sadd.s32 %s24, %s25
      %p70 = scmp.lt.s32.totalorder %s69, 1
      %s71 = scalar_select %p70, %s69, 1
      %s72 = sadd.s32 %s36, %s32
      %p73 = scmp.lt.s32.totalorder %s72, 1
      %s74 = scalar_select %p73, %s72, 1
      %s75 = ssub.s32 %s71, %s74
      %p76 = scmp.eq.s32.totalorder %s75, 0
      %s78 = sadd.s32 %s77, 1
      %s79 = scalar_select %p76, %s77, %s78
      %p82 = pneg %p76
      %p83 = scmp.eq.s32.totalorder %s17, 1
      %p84 = por %p82, %p83
      %p85 = scmp.ne.s32.totalorder %s77, %s80
      %p86 = scmp.eq.s32.totalorder %s17, 0
      %p87 = por %p85, %p86
      %p88 = scmp.ne.s32.totalorder %s77, %s80
      %p89 = scmp.eq.s32.totalorder %s22, 1
      %p90 = por %p88, %p89
      %p91 = scmp.ne.s32.totalorder %s80, %s81
      %p92 = scmp.eq.s32.totalorder %s22, 0
      %p93 = por %p91, %p92
      %p94 = scmp.ne.s32.totalorder %s80, %s81
      %p95 = scmp.eq.s32.totalorder %s23, 1
      %p96 = por %p94, %p95
      %p98 = scmp.ne.s32.totalorder %s81, %s97
      %p99 = scmp.eq.s32.totalorder %s23, 0
      %p100 = por %p98, %p99
      %s101 = ssub.s32 %s24, %s36
      %p102 = scmp.eq.s32.totalorder %s101, 0
      %s104 = sadd.s32 %s103, 1
      %s105 = scalar_select %p102, %s103, %s104
      %p108 = pneg %p102
      %p109 = scmp.eq.s32.totalorder %s17, 1
      %p110 = por %p108, %p109
      %p111 = scmp.ne.s32.totalorder %s103, %s106
      %p112 = scmp.eq.s32.totalorder %s17, 0
      %p113 = por %p111, %p112
      %p114 = scmp.ne.s32.totalorder %s103, %s106
      %p115 = scmp.eq.s32.totalorder %s22, 1
      %p116 = por %p114, %p115
      %p117 = scmp.ne.s32.totalorder %s106, %s107
      %p118 = scmp.eq.s32.totalorder %s22, 0
      %p119 = por %p117, %p118
      %p120 = scmp.ne.s32.totalorder %s106, %s107
      %p121 = scmp.eq.s32.totalorder %s23, 1
      %p122 = por %p120, %p121
      %p124 = scmp.ne.s32.totalorder %s107, %s123
      %p125 = scmp.eq.s32.totalorder %s23, 0
      %p126 = por %p124, %p125
      %p127 = scmp.le.s32.totalorder 1, %s17
      %p128 = scmp.lt.s32.totalorder %s17, 3
      %p129 = pnand %p127, %p128
      %p130 = pneg %p129
      // Predicated region
      $region9: #{tpu_custom_call.1} parent=5 // pred_check
        _
      $region10: #{tpu_custom_call.1} parent=5 // pred_check_branch
        %132 = sbr.rel (%p129) target = $region12
      $region11: #{tpu_custom_call.1} parent=5 // pred_region
        %s133 = ssub.s32 %s17, 1
      $region12: #{tpu_custom_call.1} parent=5 // pred_fallthru
        _
      %p134 = scmp.lt.s32.totalorder %s17, 2
      // Predicated region
      $region13: #{tpu_custom_call.1} parent=5 // pred_check
        %p135 = pneg %p134
      $region14: #{tpu_custom_call.1} parent=5 // pred_check_branch
        %137 = sbr.rel (%p135) target = $region16
      $region15: #{tpu_custom_call.1} parent=5 // pred_region
        // Predicated region
        $region17: #{tpu_custom_call.1} parent=15 // pred_check
          %p138 = pneg %p55
        $region18: #{tpu_custom_call.1} parent=15 // pred_check_branch
          %140 = sbr.rel (%p138) target = $region20
        $region19: #{tpu_custom_call.1} parent=15 // pred_region
          %s141 = sand.u32 %s45, 1
          %s142 = scalar_lea.sflag [#allocation5], %s141
          %s143 = sand.u32 %s45, 1
          %s144 = smul.addr %s143, 64
          %s145 = scalar_lea.vmem [#allocation4], %s144
          %s146 = sadd.s32 %s24, %s25
          %p147 = scmp.lt.s32.totalorder %s146, 1
          %s148 = scalar_select %p147, %s146, 1
          %150 = vsyncadd %s142, 0
          %s151 = smul.addr %s148, 8
          %s152 = smul.addr %s151, 8
          %s153 = scalar_lea.hbm %s0, %s152
          %s154 = sshll.u32 %s153, 4
          %s155 = int_to_ptr.hbm [resolvable:$true] %s154
          %s156 = sshll.u32 %s145, 4
          %s157 = int_to_ptr.vmem [resolvable:$true] %s156
          %162 = dma.hbm_to_vmem [thread:$0]  %s155, 1024, %s157, %s142, 128, 128, 8
        $region20: #{tpu_custom_call.1} parent=15 // pred_fallthru
          _
        // Predicated region
        $region21: #{tpu_custom_call.1} parent=15 // pred_check
          %p163 = pneg %p87
        $region22: #{tpu_custom_call.1} parent=15 // pred_check_branch
          %165 = sbr.rel (%p163) target = $region24
        $region23: #{tpu_custom_call.1} parent=15 // pred_region
          %s166 = sand.u32 %s77, 1
          %s167 = scalar_lea.sflag [#allocation8], %s166
          %s168 = sand.u32 %s77, 1
          %s169 = smul.addr %s168, 64
          %s170 = scalar_lea.vmem [#allocation7], %s169
          %s171 = sadd.s32 %s24, %s25
          %p172 = scmp.lt.s32.totalorder %s171, 1
          %s173 = scalar_select %p172, %s171, 1
          %175 = vsyncadd %s167, 0
          %s176 = smul.addr %s173, 8
          %s177 = smul.addr %s176, 8
          %s178 = scalar_lea.hbm %s1, %s177
          %s179 = sshll.u32 %s178, 4
          %s180 = int_to_ptr.hbm [resolvable:$true] %s179
          %s181 = sshll.u32 %s170, 4
          %s182 = int_to_ptr.vmem [resolvable:$true] %s181
          %187 = dma.hbm_to_vmem [thread:$0]  %s180, 1024, %s182, %s167, 128, 128, 8
        $region24: #{tpu_custom_call.1} parent=15 // pred_fallthru
          _
      $region16: #{tpu_custom_call.1} parent=5 // pred_fallthru
        _
      %p188 = scmp.le.s32.totalorder 1, %s17
      %p189 = scmp.lt.s32.totalorder %s17, 3
      %p190 = pnand %p188, %p189
      %p191 = pneg %p190
      // Predicated region
      $region25: #{tpu_custom_call.1} parent=5 // pred_check
        _
      $region26: #{tpu_custom_call.1} parent=5 // pred_check_branch
        %193 = sbr.rel (%p190) target = $region28
      $region27: #{tpu_custom_call.1} parent=5 // pred_region
        %s194 = ssub.s32 %s17, 1
        %s195 = sand.u32 %s48, 1
        %s196 = scalar_lea.sflag [#allocation5], %s195
        %s197 = sand.u32 %s48, 1
        %s198 = smul.addr %s197, 64
        %s199 = scalar_lea.vmem [#allocation4], %s198
        // Predicated region
        $region29: #{tpu_custom_call.1} parent=27 // pred_check
          %p200 = pneg %p61
        $region30: #{tpu_custom_call.1} parent=27 // pred_check_branch
          %202 = sbr.rel (%p200) target = $region32
        $region31: #{tpu_custom_call.1} parent=27 // pred_region
          %204 = dma.done %s196, 1024
        $region32: #{tpu_custom_call.1} parent=27 // pred_fallthru
          _
        %s205 = sand.u32 %s80, 1
        %s206 = scalar_lea.sflag [#allocation8], %s205
        %s207 = sand.u32 %s80, 1
        %s208 = smul.addr %s207, 64
        %s209 = scalar_lea.vmem [#allocation7], %s208
        // Predicated region
        $region33: #{tpu_custom_call.1} parent=27 // pred_check
          %p210 = pneg %p93
        $region34: #{tpu_custom_call.1} parent=27 // pred_check_branch
          %212 = sbr.rel (%p210) target = $region36
        $region35: #{tpu_custom_call.1} parent=27 // pred_region
          %214 = dma.done %s206, 1024
        $region36: #{tpu_custom_call.1} parent=27 // pred_fallthru
          _
        %s215 = sand.u32 %s48, 1
        %s216 = scalar_lea.sflag [#allocation5], %s215
        %s217 = sand.u32 %s48, 1
        %s218 = smul.addr %s217, 64
        %s219 = scalar_lea.vmem [#allocation4], %s218
        %p220 = pneg %p61
        %p221 = pneg %p58
        %s222 = sand.u32 %s80, 1
        %s223 = scalar_lea.sflag [#allocation8], %s222
        %s224 = sand.u32 %s80, 1
        %s225 = smul.addr %s224, 64
        %s226 = scalar_lea.vmem [#allocation7], %s225
        %p227 = pneg %p93
        %p228 = pneg %p90
        %p229 = pneg %p119
        %p230 = pneg %p116
        %s231 = sand.u32 %s106, 1
        %s232 = scalar_lea.sflag [#allocation6], %s231
        %s233 = sand.u32 %s106, 1
        %s234 = scalar_lea.vmem [#allocation9], %s233
        %s235 = sadd.s32 %s26, %s27
        %p236 = scmp.lt.s32.totalorder %s235, 1
        %s237 = scalar_select %p236, %s235, 1
        %s238 = sadd.s32 %s26, %s27
        %p239 = scmp.lt.s32.totalorder %s238, 1
        %s240 = scalar_select %p239, %s238, 1
        %s241 = sadd.s32 %s26, %s27
        %p242 = scmp.eq.s32.totalorder %s27, 0
        // Predicated region
        $region37: #{tpu_custom_call.1} parent=27 // pred_check
          %p243 = pneg %p242
        $region38: #{tpu_custom_call.1} parent=27 // pred_check_branch
          %245 = sbr.rel (%p243) target = $region40
        $region39: #{tpu_custom_call.1} parent=27 // pred_region
          %vm246 = vcmask 130048
          %247 = vst.msk [vmem:[#allocation2] sm:$0xff] %vm246, 0.0
          %248 = vst.msk [vmem:[#allocation2 + $0x8] sm:$0xff] %vm246, 0.0
          %249 = vst.msk [vmem:[#allocation3] sm:$0xff] %vm246, 0.0
          %250 = vst.msk [vmem:[#allocation3 + $0x8] sm:$0xff] %vm246, 0.0
        $region40: #{tpu_custom_call.1} parent=27 // pred_fallthru
          _
        %p251 = scmp.lt.s32.totalorder %s241, 2
        // Predicated region
        $region41: #{tpu_custom_call.1} parent=27 // pred_check
          %p252 = pneg %p251
        $region42: #{tpu_custom_call.1} parent=27 // pred_check_branch
          %254 = sbr.rel (%p252) target = $region44
        $region43: #{tpu_custom_call.1} parent=27 // pred_region
          %v255 = vld [vmem:[%s199] sm:$0xff]
          %v256 = vld [vmem:[%s199 + $0x8] sm:$0xff]
          %v257 = vld [vmem:[%s209] sm:$0xff]
          %v258 = vld [vmem:[%s209 + $0x8] sm:$0xff]
          %v259 = vsub.f32 %v255, %v257
          %v260 = vsub.f32 %v256, %v258
          %v261 = vand.u32 2147483647, %v259
          %v262 = vand.u32 2147483647, %v260
          %vm263 = vcmp.lt.f32.partialorder %v261, 1.0
          %vm264 = vcmp.lt.f32.partialorder %v262, 1.0
          %v265 = vmul.f32 %v259, 0.5
          %v266 = vmul.f32 %v260, 0.5
          %v267 = vmul.f32 %v265, %v259
          %v268 = vmul.f32 %v266, %v260
          %v269 = vsub.f32 %v261, 0.5
          %v270 = vsub.f32 %v262, 0.5
          %v271 = vsel %vm263, %v267, %v269
          %v272 = vsel %vm264, %v268, %v270
          %v273 = vadd.f32 %v271, 0.0
          %v274 = vadd.f32 %v272, 0.0
          %s275 = scalar_lea.vmem %s199, 16 [#allocation4]
          %v276 = vld [vmem:[%s275] sm:$0xff]
          %v277 = vld [vmem:[%s275 + $0x8] sm:$0xff]
          %s278 = scalar_lea.vmem %s209, 16 [#allocation7]
          %v279 = vld [vmem:[%s278] sm:$0xff]
          %v280 = vld [vmem:[%s278 + $0x8] sm:$0xff]
          %v281 = vsub.f32 %v276, %v279
          %v282 = vsub.f32 %v277, %v280
          %v283 = vand.u32 2147483647, %v281
          %v284 = vand.u32 2147483647, %v282
          %vm285 = vcmp.lt.f32.partialorder %v283, 1.0
          %vm286 = vcmp.lt.f32.partialorder %v284, 1.0
          %v287 = vmul.f32 %v281, 0.5
          %v288 = vmul.f32 %v282, 0.5
          %v289 = vmul.f32 %v287, %v281
          %v290 = vmul.f32 %v288, %v282
          %v291 = vsub.f32 %v283, 0.5
          %v292 = vsub.f32 %v284, 0.5
          %v293 = vsel %vm285, %v289, %v291
          %v294 = vsel %vm286, %v290, %v292
          %v295 = vadd.f32 %v293, 0.0
          %v296 = vadd.f32 %v294, 0.0
          %v297 = vadd.f32 %v273, %v295
          %v298 = vadd.f32 %v274, %v296
          %s299 = scalar_lea.vmem %s199, 32 [#allocation4]
          %v300 = vld [vmem:[%s299] sm:$0xff]
          %v301 = vld [vmem:[%s299 + $0x8] sm:$0xff]
          %s302 = scalar_lea.vmem %s209, 32 [#allocation7]
          %v303 = vld [vmem:[%s302] sm:$0xff]
          %v304 = vld [vmem:[%s302 + $0x8] sm:$0xff]
          %v305 = vsub.f32 %v300, %v303
          %v306 = vsub.f32 %v301, %v304
          %v307 = vand.u32 2147483647, %v305
          %vm308 = vcmp.le.f32.partialorder %v307, 0.7853982
          %vm309 = vcmp.lt.s32.totalorder %v305, 0
          %v310 = vand.u32 %v305, 2139095040
          %v311 = vshrl.u32 %v310, 23
          %v312 = vsub.s32 %v311, 127
          %v313 = vand.u32 2147483647, %v305
          %v314 = vand.u32 %v313, 8388607
          %v315 = vor.u32 %v314, 8388608
          %v316 = vsub.s32 0, %v315
          %v317 = vadd.s32 %v312, 1
          %vm318 = vcmp.gt.s32.totalorder %v317, 0
          %v319 = vsel %vm318, %v317, 0
          %v320 = vshrl.u32 %v319, 5
          %v321 = vand.u32 %v319, 31
          %v322 = vsub.s32 32, %v321
          %v323 = vshrl.u32 683565275, %v322
          %v324 = vshll.u32 683565275, %v321
          %v325 = vshrl.u32 2475754826, %v322
          %v326 = vor.u32 %v324, %v325
          %v327 = vshll.u32 2475754826, %v321
          %v328 = vshrl.u32 2131351028, %v322
          %v329 = vor.u32 %v327, %v328
          %v330 = vshll.u32 2131351028, %v321
          %v331 = vshrl.u32 2102212464, %v322
          %v332 = vor.u32 %v330, %v331
          %v333 = vshll.u32 2102212464, %v321
          %v334 = vshrl.u32 920167782, %v322
          %v335 = vor.u32 %v333, %v334
          %v336 = vshll.u32 920167782, %v321
          %v337 = vshrl.u32 1326507024, %v322
          %v338 = vor.u32 %v336, %v337
          %vm339 = vcmp.lt.s32.totalorder %v320, 1
          %vm340 = vcmp.lt.s32.totalorder %v320, 2
          %vm341 = vcmp.lt.s32.totalorder %v320, 3
          %vm342 = vcmp.lt.s32.totalorder %v320, 4
          %v343 = vsel %vm339, %v323, %v326
          %v344 = vsel %vm342, %v332, 2102212464
          %v345 = vsel %vm341, %v329, %v344
          %v346 = vsel %vm340, %v343, %v345
          %v347 = vsel %vm339, %v326, %v329
          %v348 = vsel %vm342, %v335, 920167782
          %v349 = vsel %vm341, %v332, %v348
          %v350 = vsel %vm340, %v347, %v349
          %v351 = vsel %vm339, %v329, %v332
          %v352 = vsel %vm342, %v338, 1326507024
          %v353 = vsel %vm341, %v335, %v352
          %v354 = vsel %vm340, %v351, %v353
          %v355 = vshll.u32 %v315, 8
          %v356 = vand.u32 %v355, 65535
          %v357 = vshrl.u32 %v355, 16
          %v358 = vand.u32 %v354, 65535
          %v359 = vshrl.u32 %v354, 16
          %v360 = vmul.u32 %v356, %v358
          %v361 = vmul.u32 %v356, %v359
          %v362 = vmul.u32 %v357, %v358
          %v363 = vmul.u32 %v357, %v359
          %v364 = vshll.u32 %v361, 16
          %v365 = vshrl.u32 %v361, 16
          %v366 = vshll.u32 %v362, 16
          %v367 = vshrl.u32 %v362, 16
          %vm368 = vc.u32 %v360, %v364
          %v369 = vsel %vm368, 1, 0
          %v370 = vadd.s32 %v360, %v364
          %v371 = vadd.s32 %v363, %v369
          %vm372 = vc.u32 %v370, %v366
          %v373 = vsel %vm372, 1, 0
          %v374 = vadd.s32 %v370, %v366
          %v375 = vadd.s32 %v371, %v373
          %v376 = vadd.s32 %v375, %v365
          %v377 = vadd.s32 %v376, %v367
          %v378 = vand.u32 %v355, 65535
          %v379 = vshrl.u32 %v355, 16
          %v380 = vand.u32 %v350, 65535
          %v381 = vshrl.u32 %v350, 16
          %v382 = vmul.u32 %v378, %v380
          %v383 = vmul.u32 %v378, %v381
          %v384 = vmul.u32 %v379, %v380
          %v385 = vmul.u32 %v379, %v381
          %v386 = vshll.u32 %v383, 16
          %v387 = vshrl.u32 %v383, 16
          %v388 = vshll.u32 %v384, 16
          %v389 = vshrl.u32 %v384, 16
          %vm390 = vc.u32 %v382, %v386
          %v391 = vsel %vm390, 1, 0
          %v392 = vadd.s32 %v382, %v386
          %v393 = vadd.s32 %v385, %v391
          %vm394 = vc.u32 %v392, %v388
          %v395 = vsel %vm394, 1, 0
          %v396 = vadd.s32 %v392, %v388
          %v397 = vadd.s32 %v393, %v395
          %v398 = vadd.s32 %v397, %v387
          %v399 = vadd.s32 %v398, %v389
          %v400 = vmul.u32 %v355, %v346
          %v401 = vadd.s32 %v377, %v396
          %vm402 = vc.u32 %v377, %v396
          %v403 = vadd.s32 %v399, 1
          %v404 = vsel %vm402, %v403, %v399
          %v405 = vadd.s32 %v400, %v404
          %v406 = vadd.s32 %v405, 536870912
          %v407 = vshrl.u32 %v406, 30
          %v408 = vshll.u32 %v407, 30
          %v409 = vsub.s32 %v405, %v408
          %vm410 = vcmp.lt.s32.totalorder %v409, 0
          %v411 = vsub.s32 0, %v409
          %v412 = vsel %vm410, %v411, %v409
          %v413 = vclz %v412
          %v414 = vsub.s32 %v413, 2
          %vm415 = vcmp.gt.s32.totalorder 0, %v414
          %v416 = vsel %vm415, 0, %v414
          %v417 = vsub.s32 32, %v416
          %v418 = vshll.u32 %v409, %v416
          %v419 = vshrl.u32 %v401, %v417
          %v420 = vor.u32 %v418, %v419
          %v421 = vsub.s32 4294967266, %v416
          %v422 = vadd.s32 %v421, 127
          %v423 = vshll.u32 %v422, 23
          %v424 = vor.u32 4788187, %v423
          %v425 = vand.u32 2147483647, %v424
          %v427 = vcvt.s32.f32 %v420
          %v428 = vmul.f32 %v427, %v425
          %v429 = vxor.u32 %v428, 2147483648
          %v430 = vsel %vm309, %v429, %v428
          %v431 = vsub.s32 4, %v407
          %v432 = vsel %vm309, %v431, %v407
          %v433 = vsel %vm308, %v305, %v430
          %v434 = vsel %vm308, 0, %v432
          %v435 = vmul.f32 %v433, %v433
          %v436 = vmul.f32 %v435, -0.001358992
          %v437 = vadd.f32 %v436, 0.041655596
          %v438 = vmul.f32 %v435, %v437
          %v439 = vadd.f32 %v438, -0.4999988
          %v440 = vmul.f32 %v435, %v439
          %v441 = vadd.f32 1.0, %v440
          %v442 = vmul.f32 %v433, %v433
          %v443 = vmul.f32 %v442, -0.00019511016
          %v444 = vadd.f32 %v443, 0.008332121
          %v445 = vmul.f32 %v442, %v444
          %v446 = vadd.f32 %v445, -0.16666654
          %v447 = vmul.f32 %v442, %v446
          %v448 = vadd.f32 %v447, 1.0
          %v449 = vmul.f32 %v448, %v433
          %vm450 = vweird.f32 %v305
          %v451 = vand.u32 %v434, 3
          %vm452 = vcmp.lt.s32.totalorder %v451, 2
          %vm453 = vcmp.eq.s32.totalorder %v451, 0
          %v454 = vxor.u32 %v449, 2147483648
          %v455 = vsel %vm453, %v441, %v454
          %vm456 = vcmp.eq.s32.totalorder %v451, 2
          %v457 = vxor.u32 %v441, 2147483648
          %v458 = vsel %vm456, %v457, %v449
          %v459 = vsel %vm452, %v455, %v458
          %v460 = vsel %vm450, nan, %v459
          %v461 = vand.u32 2147483647, %v306
          %vm462 = vcmp.le.f32.partialorder %v461, 0.7853982
          %vm463 = vcmp.lt.s32.totalorder %v306, 0
          %v464 = vand.u32 %v306, 2139095040
          %v465 = vshrl.u32 %v464, 23
          %v466 = vsub.s32 %v465, 127
          %v467 = vand.u32 2147483647, %v306
          %v468 = vand.u32 %v467, 8388607
          %v469 = vor.u32 %v468, 8388608
          %v470 = vsub.s32 0, %v469
          %v471 = vadd.s32 %v466, 1
          %vm472 = vcmp.gt.s32.totalorder %v471, 0
          %v473 = vsel %vm472, %v471, 0
          %v474 = vshrl.u32 %v473, 5
          %v475 = vand.u32 %v473, 31
          %v476 = vsub.s32 32, %v475
          %v477 = vshrl.u32 683565275, %v476
          %v478 = vshll.u32 683565275, %v475
          %v479 = vshrl.u32 2475754826, %v476
          %v480 = vor.u32 %v478, %v479
          %v481 = vshll.u32 2475754826, %v475
          %v482 = vshrl.u32 2131351028, %v476
          %v483 = vor.u32 %v481, %v482
          %v484 = vshll.u32 2131351028, %v475
          %v485 = vshrl.u32 2102212464, %v476
          %v486 = vor.u32 %v484, %v485
          %v487 = vshll.u32 2102212464, %v475
          %v488 = vshrl.u32 920167782, %v476
          %v489 = vor.u32 %v487, %v488
          %v490 = vshll.u32 920167782, %v475
          %v491 = vshrl.u32 1326507024, %v476
          %v492 = vor.u32 %v490, %v491
          %vm493 = vcmp.lt.s32.totalorder %v474, 1
          %vm494 = vcmp.lt.s32.totalorder %v474, 2
          %vm495 = vcmp.lt.s32.totalorder %v474, 3
          %vm496 = vcmp.lt.s32.totalorder %v474, 4
          %v497 = vsel %vm493, %v477, %v480
          %v498 = vsel %vm496, %v486, 2102212464
          %v499 = vsel %vm495, %v483, %v498
          %v500 = vsel %vm494, %v497, %v499
          %v501 = vsel %vm493, %v480, %v483
          %v502 = vsel %vm496, %v489, 920167782
          %v503 = vsel %vm495, %v486, %v502
          %v504 = vsel %vm494, %v501, %v503
          %v505 = vsel %vm493, %v483, %v486
          %v506 = vsel %vm496, %v492, 1326507024
          %v507 = vsel %vm495, %v489, %v506
          %v508 = vsel %vm494, %v505, %v507
          %v509 = vshll.u32 %v469, 8
          %v510 = vand.u32 %v509, 65535
          %v511 = vshrl.u32 %v509, 16
          %v512 = vand.u32 %v508, 65535
          %v513 = vshrl.u32 %v508, 16
          %v514 = vmul.u32 %v510, %v512
          %v515 = vmul.u32 %v510, %v513
          %v516 = vmul.u32 %v511, %v512
          %v517 = vmul.u32 %v511, %v513
          %v518 = vshll.u32 %v515, 16
          %v519 = vshrl.u32 %v515, 16
          %v520 = vshll.u32 %v516, 16
          %v521 = vshrl.u32 %v516, 16
          %vm522 = vc.u32 %v514, %v518
          %v523 = vsel %vm522, 1, 0
          %v524 = vadd.s32 %v514, %v518
          %v525 = vadd.s32 %v517, %v523
          %vm526 = vc.u32 %v524, %v520
          %v527 = vsel %vm526, 1, 0
          %v528 = vadd.s32 %v524, %v520
          %v529 = vadd.s32 %v525, %v527
          %v530 = vadd.s32 %v529, %v519
          %v531 = vadd.s32 %v530, %v521
          %v532 = vand.u32 %v509, 65535
          %v533 = vshrl.u32 %v509, 16
          %v534 = vand.u32 %v504, 65535
          %v535 = vshrl.u32 %v504, 16
          %v536 = vmul.u32 %v532, %v534
          %v537 = vmul.u32 %v532, %v535
          %v538 = vmul.u32 %v533, %v534
          %v539 = vmul.u32 %v533, %v535
          %v540 = vshll.u32 %v537, 16
          %v541 = vshrl.u32 %v537, 16
          %v542 = vshll.u32 %v538, 16
          %v543 = vshrl.u32 %v538, 16
          %vm544 = vc.u32 %v536, %v540
          %v545 = vsel %vm544, 1, 0
          %v546 = vadd.s32 %v536, %v540
          %v547 = vadd.s32 %v539, %v545
          %vm548 = vc.u32 %v546, %v542
          %v549 = vsel %vm548, 1, 0
          %v550 = vadd.s32 %v546, %v542
          %v551 = vadd.s32 %v547, %v549
          %v552 = vadd.s32 %v551, %v541
          %v553 = vadd.s32 %v552, %v543
          %v554 = vmul.u32 %v509, %v500
          %v555 = vadd.s32 %v531, %v550
          %vm556 = vc.u32 %v531, %v550
          %v557 = vadd.s32 %v553, 1
          %v558 = vsel %vm556, %v557, %v553
          %v559 = vadd.s32 %v554, %v558
          %v560 = vadd.s32 %v559, 536870912
          %v561 = vshrl.u32 %v560, 30
          %v562 = vshll.u32 %v561, 30
          %v563 = vsub.s32 %v559, %v562
          %vm564 = vcmp.lt.s32.totalorder %v563, 0
          %v565 = vsub.s32 0, %v563
          %v566 = vsel %vm564, %v565, %v563
          %v567 = vclz %v566
          %v568 = vsub.s32 %v567, 2
          %vm569 = vcmp.gt.s32.totalorder 0, %v568
          %v570 = vsel %vm569, 0, %v568
          %v571 = vsub.s32 32, %v570
          %v572 = vshll.u32 %v563, %v570
          %v573 = vshrl.u32 %v555, %v571
          %v574 = vor.u32 %v572, %v573
          %v575 = vsub.s32 4294967266, %v570
          %v576 = vadd.s32 %v575, 127
          %v577 = vshll.u32 %v576, 23
          %v578 = vor.u32 4788187, %v577
          %v579 = vand.u32 2147483647, %v578
          %v581 = vcvt.s32.f32 %v574
          %v582 = vmul.f32 %v581, %v579
          %v583 = vxor.u32 %v582, 2147483648
          %v584 = vsel %vm463, %v583, %v582
          %v585 = vsub.s32 4, %v561
          %v586 = vsel %vm463, %v585, %v561
          %v587 = vsel %vm462, %v306, %v584
          %v588 = vsel %vm462, 0, %v586
          %v589 = vmul.f32 %v587, %v587
          %v590 = vmul.f32 %v589, -0.001358992
          %v591 = vadd.f32 %v590, 0.041655596
          %v592 = vmul.f32 %v589, %v591
          %v593 = vadd.f32 %v592, -0.4999988
          %v594 = vmul.f32 %v589, %v593
          %v595 = vadd.f32 1.0, %v594
          %v596 = vmul.f32 %v587, %v587
          %v597 = vmul.f32 %v596, -0.00019511016
          %v598 = vadd.f32 %v597, 0.008332121
          %v599 = vmul.f32 %v596, %v598
          %v600 = vadd.f32 %v599, -0.16666654
          %v601 = vmul.f32 %v596, %v600
          %v602 = vadd.f32 %v601, 1.0
          %v603 = vmul.f32 %v602, %v587
          %vm604 = vweird.f32 %v306
          %v605 = vand.u32 %v588, 3
          %vm606 = vcmp.lt.s32.totalorder %v605, 2
          %vm607 = vcmp.eq.s32.totalorder %v605, 0
          %v608 = vxor.u32 %v603, 2147483648
          %v609 = vsel %vm607, %v595, %v608
          %vm610 = vcmp.eq.s32.totalorder %v605, 2
          %v611 = vxor.u32 %v595, 2147483648
          %v612 = vsel %vm610, %v611, %v603
          %v613 = vsel %vm606, %v609, %v612
          %v614 = vsel %vm604, nan, %v613
          %v615 = vsub.f32 1.0, %v460
          %v616 = vsub.f32 1.0, %v614
          %v617 = vadd.f32 %v615, 0.0
          %v618 = vadd.f32 %v616, 0.0
          %s619 = scalar_lea.vmem %s199, 48 [#allocation4]
          %v620 = vld [vmem:[%s619] sm:$0xff]
          %v621 = vld [vmem:[%s619 + $0x8] sm:$0xff]
          %s622 = scalar_lea.vmem %s209, 48 [#allocation7]
          %v623 = vld [vmem:[%s622] sm:$0xff]
          %v624 = vld [vmem:[%s622 + $0x8] sm:$0xff]
          %v625 = vsub.f32 %v620, %v623
          %v626 = vsub.f32 %v621, %v624
          %v627 = vand.u32 2147483647, %v625
          %vm628 = vcmp.le.f32.partialorder %v627, 0.7853982
          %vm629 = vcmp.lt.s32.totalorder %v625, 0
          %v630 = vand.u32 %v625, 2139095040
          %v631 = vshrl.u32 %v630, 23
          %v632 = vsub.s32 %v631, 127
          %v633 = vand.u32 2147483647, %v625
          %v634 = vand.u32 %v633, 8388607
          %v635 = vor.u32 %v634, 8388608
          %v636 = vsub.s32 0, %v635
          %v637 = vadd.s32 %v632, 1
          %vm638 = vcmp.gt.s32.totalorder %v637, 0
          %v639 = vsel %vm638, %v637, 0
          %v640 = vshrl.u32 %v639, 5
          %v641 = vand.u32 %v639, 31
          %v642 = vsub.s32 32, %v641
          %v643 = vshrl.u32 683565275, %v642
          %v644 = vshll.u32 683565275, %v641
          %v645 = vshrl.u32 2475754826, %v642
          %v646 = vor.u32 %v644, %v645
          %v647 = vshll.u32 2475754826, %v641
          %v648 = vshrl.u32 2131351028, %v642
          %v649 = vor.u32 %v647, %v648
          %v650 = vshll.u32 2131351028, %v641
          %v651 = vshrl.u32 2102212464, %v642
          %v652 = vor.u32 %v650, %v651
          %v653 = vshll.u32 2102212464, %v641
          %v654 = vshrl.u32 920167782, %v642
          %v655 = vor.u32 %v653, %v654
          %v656 = vshll.u32 920167782, %v641
          %v657 = vshrl.u32 1326507024, %v642
          %v658 = vor.u32 %v656, %v657
          %vm659 = vcmp.lt.s32.totalorder %v640, 1
          %vm660 = vcmp.lt.s32.totalorder %v640, 2
          %vm661 = vcmp.lt.s32.totalorder %v640, 3
          %vm662 = vcmp.lt.s32.totalorder %v640, 4
          %v663 = vsel %vm659, %v643, %v646
          %v664 = vsel %vm662, %v652, 2102212464
          %v665 = vsel %vm661, %v649, %v664
          %v666 = vsel %vm660, %v663, %v665
          %v667 = vsel %vm659, %v646, %v649
          %v668 = vsel %vm662, %v655, 920167782
          %v669 = vsel %vm661, %v652, %v668
          %v670 = vsel %vm660, %v667, %v669
          %v671 = vsel %vm659, %v649, %v652
          %v672 = vsel %vm662, %v658, 1326507024
          %v673 = vsel %vm661, %v655, %v672
          %v674 = vsel %vm660, %v671, %v673
          %v675 = vshll.u32 %v635, 8
          %v676 = vand.u32 %v675, 65535
          %v677 = vshrl.u32 %v675, 16
          %v678 = vand.u32 %v674, 65535
          %v679 = vshrl.u32 %v674, 16
          %v680 = vmul.u32 %v676, %v678
          %v681 = vmul.u32 %v676, %v679
          %v682 = vmul.u32 %v677, %v678
          %v683 = vmul.u32 %v677, %v679
          %v684 = vshll.u32 %v681, 16
          %v685 = vshrl.u32 %v681, 16
          %v686 = vshll.u32 %v682, 16
          %v687 = vshrl.u32 %v682, 16
          %vm688 = vc.u32 %v680, %v684
          %v689 = vsel %vm688, 1, 0
          %v690 = vadd.s32 %v680, %v684
          %v691 = vadd.s32 %v683, %v689
          %vm692 = vc.u32 %v690, %v686
          %v693 = vsel %vm692, 1, 0
          %v694 = vadd.s32 %v690, %v686
          %v695 = vadd.s32 %v691, %v693
          %v696 = vadd.s32 %v695, %v685
          %v697 = vadd.s32 %v696, %v687
          %v698 = vand.u32 %v675, 65535
          %v699 = vshrl.u32 %v675, 16
          %v700 = vand.u32 %v670, 65535
          %v701 = vshrl.u32 %v670, 16
          %v702 = vmul.u32 %v698, %v700
          %v703 = vmul.u32 %v698, %v701
          %v704 = vmul.u32 %v699, %v700
          %v705 = vmul.u32 %v699, %v701
          %v706 = vshll.u32 %v703, 16
          %v707 = vshrl.u32 %v703, 16
          %v708 = vshll.u32 %v704, 16
          %v709 = vshrl.u32 %v704, 16
          %vm710 = vc.u32 %v702, %v706
          %v711 = vsel %vm710, 1, 0
          %v712 = vadd.s32 %v702, %v706
          %v713 = vadd.s32 %v705, %v711
          %vm714 = vc.u32 %v712, %v708
          %v715 = vsel %vm714, 1, 0
          %v716 = vadd.s32 %v712, %v708
          %v717 = vadd.s32 %v713, %v715
          %v718 = vadd.s32 %v717, %v707
          %v719 = vadd.s32 %v718, %v709
          %v720 = vmul.u32 %v675, %v666
          %v721 = vadd.s32 %v697, %v716
          %vm722 = vc.u32 %v697, %v716
          %v723 = vadd.s32 %v719, 1
          %v724 = vsel %vm722, %v723, %v719
          %v725 = vadd.s32 %v720, %v724
          %v726 = vadd.s32 %v725, 536870912
          %v727 = vshrl.u32 %v726, 30
          %v728 = vshll.u32 %v727, 30
          %v729 = vsub.s32 %v725, %v728
          %vm730 = vcmp.lt.s32.totalorder %v729, 0
          %v731 = vsub.s32 0, %v729
          %v732 = vsel %vm730, %v731, %v729
          %v733 = vclz %v732
          %v734 = vsub.s32 %v733, 2
          %vm735 = vcmp.gt.s32.totalorder 0, %v734
          %v736 = vsel %vm735, 0, %v734
          %v737 = vsub.s32 32, %v736
          %v738 = vshll.u32 %v729, %v736
          %v739 = vshrl.u32 %v721, %v737
          %v740 = vor.u32 %v738, %v739
          %v741 = vsub.s32 4294967266, %v736
          %v742 = vadd.s32 %v741, 127
          %v743 = vshll.u32 %v742, 23
          %v744 = vor.u32 4788187, %v743
          %v745 = vand.u32 2147483647, %v744
          %v747 = vcvt.s32.f32 %v740
          %v748 = vmul.f32 %v747, %v745
          %v749 = vxor.u32 %v748, 2147483648
          %v750 = vsel %vm629, %v749, %v748
          %v751 = vsub.s32 4, %v727
          %v752 = vsel %vm629, %v751, %v727
          %v753 = vsel %vm628, %v625, %v750
          %v754 = vsel %vm628, 0, %v752
          %v755 = vmul.f32 %v753, %v753
          %v756 = vmul.f32 %v755, -0.001358992
          %v757 = vadd.f32 %v756, 0.041655596
          %v758 = vmul.f32 %v755, %v757
          %v759 = vadd.f32 %v758, -0.4999988
          %v760 = vmul.f32 %v755, %v759
          %v761 = vadd.f32 1.0, %v760
          %v762 = vmul.f32 %v753, %v753
          %v763 = vmul.f32 %v762, -0.00019511016
          %v764 = vadd.f32 %v763, 0.008332121
          %v765 = vmul.f32 %v762, %v764
          %v766 = vadd.f32 %v765, -0.16666654
          %v767 = vmul.f32 %v762, %v766
          %v768 = vadd.f32 %v767, 1.0
          %v769 = vmul.f32 %v768, %v753
          %vm770 = vweird.f32 %v625
          %v771 = vand.u32 %v754, 3
          %vm772 = vcmp.lt.s32.totalorder %v771, 2
          %vm773 = vcmp.eq.s32.totalorder %v771, 0
          %v774 = vxor.u32 %v769, 2147483648
          %v775 = vsel %vm773, %v761, %v774
          %vm776 = vcmp.eq.s32.totalorder %v771, 2
          %v777 = vxor.u32 %v761, 2147483648
          %v778 = vsel %vm776, %v777, %v769
          %v779 = vsel %vm772, %v775, %v778
          %v780 = vsel %vm770, nan, %v779
          %v781 = vand.u32 2147483647, %v626
          %vm782 = vcmp.le.f32.partialorder %v781, 0.7853982
          %vm783 = vcmp.lt.s32.totalorder %v626, 0
          %v784 = vand.u32 %v626, 2139095040
          %v785 = vshrl.u32 %v784, 23
          %v786 = vsub.s32 %v785, 127
          %v787 = vand.u32 2147483647, %v626
          %v788 = vand.u32 %v787, 8388607
          %v789 = vor.u32 %v788, 8388608
          %v790 = vsub.s32 0, %v789
          %v791 = vadd.s32 %v786, 1
          %vm792 = vcmp.gt.s32.totalorder %v791, 0
          %v793 = vsel %vm792, %v791, 0
          %v794 = vshrl.u32 %v793, 5
          %v795 = vand.u32 %v793, 31
          %v796 = vsub.s32 32, %v795
          %v797 = vshrl.u32 683565275, %v796
          %v798 = vshll.u32 683565275, %v795
          %v799 = vshrl.u32 2475754826, %v796
          %v800 = vor.u32 %v798, %v799
          %v801 = vshll.u32 2475754826, %v795
          %v802 = vshrl.u32 2131351028, %v796
          %v803 = vor.u32 %v801, %v802
          %v804 = vshll.u32 2131351028, %v795
          %v805 = vshrl.u32 2102212464, %v796
          %v806 = vor.u32 %v804, %v805
          %v807 = vshll.u32 2102212464, %v795
          %v808 = vshrl.u32 920167782, %v796
          %v809 = vor.u32 %v807, %v808
          %v810 = vshll.u32 920167782, %v795
          %v811 = vshrl.u32 1326507024, %v796
          %v812 = vor.u32 %v810, %v811
          %vm813 = vcmp.lt.s32.totalorder %v794, 1
          %vm814 = vcmp.lt.s32.totalorder %v794, 2
          %vm815 = vcmp.lt.s32.totalorder %v794, 3
          %vm816 = vcmp.lt.s32.totalorder %v794, 4
          %v817 = vsel %vm813, %v797, %v800
          %v818 = vsel %vm816, %v806, 2102212464
          %v819 = vsel %vm815, %v803, %v818
          %v820 = vsel %vm814, %v817, %v819
          %v821 = vsel %vm813, %v800, %v803
          %v822 = vsel %vm816, %v809, 920167782
          %v823 = vsel %vm815, %v806, %v822
          %v824 = vsel %vm814, %v821, %v823
          %v825 = vsel %vm813, %v803, %v806
          %v826 = vsel %vm816, %v812, 1326507024
          %v827 = vsel %vm815, %v809, %v826
          %v828 = vsel %vm814, %v825, %v827
          %v829 = vshll.u32 %v789, 8
          %v830 = vand.u32 %v829, 65535
          %v831 = vshrl.u32 %v829, 16
          %v832 = vand.u32 %v828, 65535
          %v833 = vshrl.u32 %v828, 16
          %v834 = vmul.u32 %v830, %v832
          %v835 = vmul.u32 %v830, %v833
          %v836 = vmul.u32 %v831, %v832
          %v837 = vmul.u32 %v831, %v833
          %v838 = vshll.u32 %v835, 16
          %v839 = vshrl.u32 %v835, 16
          %v840 = vshll.u32 %v836, 16
          %v841 = vshrl.u32 %v836, 16
          %vm842 = vc.u32 %v834, %v838
          %v843 = vsel %vm842, 1, 0
          %v844 = vadd.s32 %v834, %v838
          %v845 = vadd.s32 %v837, %v843
          %vm846 = vc.u32 %v844, %v840
          %v847 = vsel %vm846, 1, 0
          %v848 = vadd.s32 %v844, %v840
          %v849 = vadd.s32 %v845, %v847
          %v850 = vadd.s32 %v849, %v839
          %v851 = vadd.s32 %v850, %v841
          %v852 = vand.u32 %v829, 65535
          %v853 = vshrl.u32 %v829, 16
          %v854 = vand.u32 %v824, 65535
          %v855 = vshrl.u32 %v824, 16
          %v856 = vmul.u32 %v852, %v854
          %v857 = vmul.u32 %v852, %v855
          %v858 = vmul.u32 %v853, %v854
          %v859 = vmul.u32 %v853, %v855
          %v860 = vshll.u32 %v857, 16
          %v861 = vshrl.u32 %v857, 16
          %v862 = vshll.u32 %v858, 16
          %v863 = vshrl.u32 %v858, 16
          %vm864 = vc.u32 %v856, %v860
          %v865 = vsel %vm864, 1, 0
          %v866 = vadd.s32 %v856, %v860
          %v867 = vadd.s32 %v859, %v865
          %vm868 = vc.u32 %v866, %v862
          %v869 = vsel %vm868, 1, 0
          %v870 = vadd.s32 %v866, %v862
          %v871 = vadd.s32 %v867, %v869
          %v872 = vadd.s32 %v871, %v861
          %v873 = vadd.s32 %v872, %v863
          %v874 = vmul.u32 %v829, %v820
          %v875 = vadd.s32 %v851, %v870
          %vm876 = vc.u32 %v851, %v870
          %v877 = vadd.s32 %v873, 1
          %v878 = vsel %vm876, %v877, %v873
          %v879 = vadd.s32 %v874, %v878
          %v880 = vadd.s32 %v879, 536870912
          %v881 = vshrl.u32 %v880, 30
          %v882 = vshll.u32 %v881, 30
          %v883 = vsub.s32 %v879, %v882
          %vm884 = vcmp.lt.s32.totalorder %v883, 0
          %v885 = vsub.s32 0, %v883
          %v886 = vsel %vm884, %v885, %v883
          %v887 = vclz %v886
          %v888 = vsub.s32 %v887, 2
          %vm889 = vcmp.gt.s32.totalorder 0, %v888
          %v890 = vsel %vm889, 0, %v888
          %v891 = vsub.s32 32, %v890
          %v892 = vshll.u32 %v883, %v890
          %v893 = vshrl.u32 %v875, %v891
          %v894 = vor.u32 %v892, %v893
          %v895 = vsub.s32 4294967266, %v890
          %v896 = vadd.s32 %v895, 127
          %v897 = vshll.u32 %v896, 23
          %v898 = vor.u32 4788187, %v897
          %v899 = vand.u32 2147483647, %v898
          %v901 = vcvt.s32.f32 %v894
          %v902 = vmul.f32 %v901, %v899
          %v903 = vxor.u32 %v902, 2147483648
          %v904 = vsel %vm783, %v903, %v902
          %v905 = vsub.s32 4, %v881
          %v906 = vsel %vm783, %v905, %v881
          %v907 = vsel %vm782, %v626, %v904
          %v908 = vsel %vm782, 0, %v906
          %v909 = vmul.f32 %v907, %v907
          %v910 = vmul.f32 %v909, -0.001358992
          %v911 = vadd.f32 %v910, 0.041655596
          %v912 = vmul.f32 %v909, %v911
          %v913 = vadd.f32 %v912, -0.4999988
          %v914 = vmul.f32 %v909, %v913
          %v915 = vadd.f32 1.0, %v914
          %v916 = vmul.f32 %v907, %v907
          %v917 = vmul.f32 %v916, -0.00019511016
          %v918 = vadd.f32 %v917, 0.008332121
          %v919 = vmul.f32 %v916, %v918
          %v920 = vadd.f32 %v919, -0.16666654
          %v921 = vmul.f32 %v916, %v920
          %v922 = vadd.f32 %v921, 1.0
          %v923 = vmul.f32 %v922, %v907
          %vm924 = vweird.f32 %v626
          %v925 = vand.u32 %v908, 3
          %vm926 = vcmp.lt.s32.totalorder %v925, 2
          %vm927 = vcmp.eq.s32.totalorder %v925, 0
          %v928 = vxor.u32 %v923, 2147483648
          %v929 = vsel %vm927, %v915, %v928
          %vm930 = vcmp.eq.s32.totalorder %v925, 2
          %v931 = vxor.u32 %v915, 2147483648
          %v932 = vsel %vm930, %v931, %v923
          %v933 = vsel %vm926, %v929, %v932
          %v934 = vsel %vm924, nan, %v933
          %v935 = vsub.f32 1.0, %v780
          %v936 = vsub.f32 1.0, %v934
          %v937 = vadd.f32 %v935, 0.0
          %v938 = vadd.f32 %v936, 0.0
          %v939 = vadd.f32 %v617, %v937
          %v940 = vadd.f32 %v618, %v938
          %v941 = vld [vmem:[#allocation2] sm:$0xff]
          %v942 = vld [vmem:[#allocation2 + $0x8] sm:$0xff]
          %v943 = vadd.f32 %v941, %v297
          %v944 = vadd.f32 %v942, %v298
          %vm945 = vcmask 130048
          %946 = vst.msk [vmem:[#allocation2] sm:$0xff] %vm945, %v943
          %947 = vst.msk [vmem:[#allocation2 + $0x8] sm:$0xff] %vm945, %v944
          %v948 = vld [vmem:[#allocation3] sm:$0xff]
          %v949 = vld [vmem:[#allocation3 + $0x8] sm:$0xff]
          %v950 = vadd.f32 %v948, %v939
          %v951 = vadd.f32 %v949, %v940
          %952 = vst.msk [vmem:[#allocation3] sm:$0xff] %vm945, %v950
          %953 = vst.msk [vmem:[#allocation3 + $0x8] sm:$0xff] %vm945, %v951
        $region44: #{tpu_custom_call.1} parent=27 // pred_fallthru
          _
        // Predicated region
        $region45: #{tpu_custom_call.1} parent=27 // pred_check
          %p954 = pneg %p242
        $region46: #{tpu_custom_call.1} parent=27 // pred_check_branch
          %956 = sbr.rel (%p954) target = $region48
        $region47: #{tpu_custom_call.1} parent=27 // pred_region
          %v957 = vld [vmem:[#allocation2] sm:$0xff]
          %v958 = vld [vmem:[#allocation2 + $0x8] sm:$0xff]
          %vm959 = vcmask 130048
          %v960 = vsel %vm959, %v957, 0.0
          %v961 = vsel %vm959, %v958, 0.0
          %v962 = vadd.f32 %v960, %v961
          %963 = vadd.xlane.f32.xlu0 %v962
          %v964 = vpop.xlane.xlu0 %963
          %v965 = vrot.slane %v964, 4
          %v966 = vadd.f32 %v964, %v965
          %v967 = vrot.slane %v966, 2
          %v968 = vadd.f32 %v966, %v967
          %v969 = vrot.slane %v968, 1
          %v970 = vadd.f32 %v968, %v969
          %s971 = vtos %v970
          %s972 = smul.f32 %s971, 0.0009765625
          %v973 = vld [vmem:[#allocation3] sm:$0xff]
          %v974 = vld [vmem:[#allocation3 + $0x8] sm:$0xff]
          %v975 = vsel %vm959, %v973, 0.0
          %v976 = vsel %vm959, %v974, 0.0
          %v977 = vadd.f32 %v975, %v976
          %978 = vadd.xlane.f32.xlu0 %v977
          %v979 = vpop.xlane.xlu0 %978
          %v980 = vrot.slane %v979, 4
          %v981 = vadd.f32 %v979, %v980
          %v982 = vrot.slane %v981, 2
          %v983 = vadd.f32 %v981, %v982
          %v984 = vrot.slane %v983, 1
          %v985 = vadd.f32 %v983, %v984
          %s986 = vtos %v985
          %s987 = smul.f32 %s986, 0.0009765625
          %s988 = sadd.f32 %s972, %s987
          %v989 = vstv %s988
          %990 = vst [vmem:[%s234] sm:$0x1] %v989
        $region48: #{tpu_custom_call.1} parent=27 // pred_fallthru
          _
        %s991 = sand.u32 %s106, 1
        %s992 = scalar_lea.sflag [#allocation6], %s991
        %s993 = sand.u32 %s106, 1
        %s994 = scalar_lea.vmem [#allocation9], %s993
        // Predicated region
        $region49: #{tpu_custom_call.1} parent=27 // pred_check
          %p995 = pneg %p116
        $region50: #{tpu_custom_call.1} parent=27 // pred_check_branch
          %997 = sbr.rel (%p995) target = $region52
        $region51: #{tpu_custom_call.1} parent=27 // pred_region
          %999 = vsyncadd %s992, 0
          %s1000 = scalar_lea.hbm %s2, %s26
          %s1002 = sshll.u32 %s994, 4
          %s1003 = int_to_ptr.vmem [resolvable:$true] %s1002
          %s1004 = sshll.u32 %s1000, 4
          %s1005 = int_to_ptr.hbm [resolvable:$true] %s1004
          %1007 = dma.vmem_to_hbm [thread:$0]  %s1003, 16, %s1005, %s992
        $region52: #{tpu_custom_call.1} parent=27 // pred_fallthru
          _
      $region28: #{tpu_custom_call.1} parent=5 // pred_fallthru
        _
      %p1008 = scmp.le.s32.totalorder 2, %s17
      // Predicated region
      $region53: #{tpu_custom_call.1} parent=5 // pred_check
        %p1009 = pneg %p1008
      $region54: #{tpu_custom_call.1} parent=5 // pred_check_branch
        %1011 = sbr.rel (%p1009) target = $region56
      $region55: #{tpu_custom_call.1} parent=5 // pred_region
        %s1012 = ssub.s32 %s17, 2
        // Predicated region
        $region57: #{tpu_custom_call.1} parent=55 // pred_check
          %p1013 = pneg %p122
        $region58: #{tpu_custom_call.1} parent=55 // pred_check_branch
          %1015 = sbr.rel (%p1013) target = $region60
        $region59: #{tpu_custom_call.1} parent=55 // pred_region
          %s1016 = sand.u32 %s107, 1
          %s1017 = scalar_lea.sflag [#allocation6], %s1016
          %s1018 = sand.u32 %s107, 1
          %s1019 = scalar_lea.vmem [#allocation9], %s1018
          %1021 = dma.done %s1017, 16
        $region60: #{tpu_custom_call.1} parent=55 // pred_fallthru
          _
      $region56: #{tpu_custom_call.1} parent=5 // pred_fallthru
        _
    $region6: #{tpu_custom_call.1} parent=1 // loop_footer
      %s21 = sadd.s32 1, %s17
    $region7: #{tpu_custom_call.1} parent=1 // loop_footer_branch
      %16 = sbr.rel target = $region3
    $region8: #{tpu_custom_call.1} parent=1 // loop_exit
      _
    %1022 = vsyncpa [#allocation5], 1
    %s1023 = scalar_lea.sflag [#allocation5], 1
    %1024 = vsyncpa %s1023, 1
    %1025 = vsyncpa [#allocation8], 1
    %s1026 = scalar_lea.sflag [#allocation8], 1
    %1027 = vsyncpa %s1026, 1
    %1028 = vsyncpa [#allocation6], 1
    %s1029 = scalar_lea.sflag [#allocation6], 1
    %1030 = vsyncpa %s1029, 1

</llo_original>
